<compile_context>
chip_gen: v6e
topology: v6e:2x2x1
jax: 0.10.0
libtpu: 0.0.40
codegen_flags: <defaults>
</compile_context>

<pallas_src>
from functools import partial

import jax
import jax.numpy as jnp
from jax.experimental import pallas as pl
from jax.experimental.pallas import tpu as pltpu

NUM_F = 14        # adults_data.shape[1] - 1   (non-label columns of adult.data)
CAT_F = 15        # categorical_data.shape[1]  (one-hot 'occupation' columns)
H1 = 40
H2 = 20
OUT_F = 1
IN_PAD = 32       # NUM_F + CAT_F = 29 -> 32-lane input slab
HID = 128         # lane-dense width for all hidden activations / weight columns
NEG_SLOPE = 0.01  # nn.LeakyReLU() default negative_slope


def _round_up(v, m):
    return ((v + m - 1) // m) * m


def _leaky_relu(v):
    return jnp.where(v > 0, v, NEG_SLOPE * v)


def adults_kernel(xc_ref,
                  wemb_ref, bemb_ref,
                  w1x_ref, w1c_ref, b1_ref,
                  w2_ref, b2_ref,
                  w3t_ref, b3_ref,
                  o_ref):
    xc = xc_ref[...]                                               # (bm, 32)

    # embedding layer + tanh  (only the categorical rows of wemb are non-zero)
    emb = jnp.tanh(
        jnp.dot(xc, wemb_ref[...], preferred_element_type=jnp.float32)
        + bemb_ref[...]
    )                                                              # (bm, 128), lanes >= CAT_F are 0

    # layer1(concat([x, emb])) == x @ W1[:NUM_F] + emb @ W1[NUM_F:]
    a1 = _leaky_relu(
        jnp.dot(xc, w1x_ref[...], preferred_element_type=jnp.float32)
        + jnp.dot(emb, w1c_ref[...], preferred_element_type=jnp.float32)
        + b1_ref[...]
    )
    # d1: Dropout(0.4) in eval mode == identity

    # layer2 + LeakyReLU
    a2 = _leaky_relu(
        jnp.dot(a1, w2_ref[...], preferred_element_type=jnp.float32)
        + b2_ref[...]
    )
    # d2: Dropout(0.4) in eval mode == identity

    # layer3: single output column -> lane reduction (XLU) + scalar bias; store only the logit.
    logit = jnp.sum(a2 * w3t_ref[...], axis=-1, keepdims=True) + b3_ref[...]
    o_ref[...] = logit                                             # (bm, 1)


def pack_params(params):
    """Pre-pack (do once): relocate / zero-pad weights to the slab + 128-lane layout.

    Weights stored (in_features, out_features); biases (1, out_features).
    """
    wemb, bemb, w1, b1, w2, b2, w3, b3 = params
    f32 = jnp.float32

    wemb_p = jnp.zeros((IN_PAD, HID), f32).at[NUM_F:NUM_F + CAT_F, :CAT_F].set(wemb.astype(f32))
    bemb_p = jnp.zeros((1, HID), f32).at[:, :CAT_F].set(bemb.astype(f32))

    w1x_p = jnp.zeros((IN_PAD, HID), f32).at[:NUM_F, :H1].set(w1[:NUM_F].astype(f32))
    w1c_p = jnp.zeros((HID, HID), f32).at[:CAT_F, :H1].set(w1[NUM_F:].astype(f32))
    b1_p = jnp.zeros((1, HID), f32).at[:, :H1].set(b1.astype(f32))

    w2_p = jnp.zeros((HID, HID), f32).at[:H1, :H2].set(w2.astype(f32))
    b2_p = jnp.zeros((1, HID), f32).at[:, :H2].set(b2.astype(f32))

    w3t_p = jnp.zeros((1, HID), f32).at[:, :H2].set(w3.astype(f32).T)   # (H2,1) -> (1,128)
    b3_p = b3.astype(f32).reshape(1, 1)

    return (wemb_p, bemb_p, w1x_p, w1c_p, b1_p, w2_p, b2_p, w3t_p, b3_p)


@partial(jax.jit, static_argnames=("bm_max",))
def adults_classifier_embeddings_forward(x, cat_x, packed_params, *, bm_max=8192):
    """x: (B, NUM_F) float32, cat_x: (B, CAT_F) float32, packed_params from pack_params().
    Returns (B, 1) float32 logits."""
    B = x.shape[0]

    # Batch tile: as large as useful, but aim for >=2 grid steps so the "parallel" axis can
    # shard over both TensorCores on v7x (harmless on single-TC v5e/v6e).
    bm = max(8, min(bm_max, _round_up(pl.cdiv(B, 2), 8)))
    B_pad = _round_up(B, bm)
    grid = (B_pad // bm,)

    # One narrow input slab: lanes [0:NUM_F) numeric, lanes [NUM_F:NUM_F+CAT_F) categorical.
    xc = jnp.zeros((B_pad, IN_PAD), jnp.float32)
    xc = xc.at[:B, :NUM_F].set(x.astype(jnp.float32))
    xc = xc.at[:B, NUM_F:NUM_F + CAT_F].set(cat_x.astype(jnp.float32))

    # Cost estimate reflecting the narrowed HBM layout.
    flops = B_pad * 2 * (2 * IN_PAD * HID + 2 * HID * HID + HID)
    transcendentals = B_pad * HID
    w_elems = 2 * IN_PAD * HID + 2 * HID * HID + 4 * HID + 1
    bytes_accessed = 4 * (B_pad * (IN_PAD + OUT_F) + w_elems)

    const = lambda i: (0, 0)
    tile = lambda i: (i, 0)

    out = pl.pallas_call(
        adults_kernel,
        out_shape=jax.ShapeDtypeStruct((B_pad, OUT_F), jnp.float32),
        grid_spec=pltpu.PrefetchScalarGridSpec(
            num_scalar_prefetch=0,
            grid=grid,
            in_specs=[
                pl.BlockSpec((bm, IN_PAD), tile),      # packed [x | cat_x] slab
                pl.BlockSpec((IN_PAD, HID), const),    # W_emb (relocated rows)
                pl.BlockSpec((1, HID), const),         # b_emb
                pl.BlockSpec((IN_PAD, HID), const),    # W1 numeric rows
                pl.BlockSpec((HID, HID), const),       # W1 embedding rows
                pl.BlockSpec((1, HID), const),         # b1
                pl.BlockSpec((HID, HID), const),       # W2
                pl.BlockSpec((1, HID), const),         # b2
                pl.BlockSpec((1, HID), const),         # W3^T (row vector)
                pl.BlockSpec((1, 1), const),           # b3
            ],
            out_specs=pl.BlockSpec((bm, OUT_F), tile),
        ),
        compiler_params=pltpu.CompilerParams(
            dimension_semantics=("parallel",),
        ),
        cost_estimate=pl.CostEstimate(
            flops=flops,
            transcendentals=transcendentals,
            bytes_accessed=bytes_accessed,
        ),
    )(xc, *packed_params)
    return out[:B]


def init_params(key):
    """nn.Linear default init: U(-1/sqrt(fan_in), 1/sqrt(fan_in)); weights stored (in, out)."""
    ks = jax.random.split(key, 8)

    def linear(kw, kb, fan_in, fan_out):
        bound = 1.0 / jnp.sqrt(jnp.float32(fan_in))
        w = jax.random.uniform(kw, (fan_in, fan_out), jnp.float32, -bound, bound)
        b = jax.random.uniform(kb, (1, fan_out), jnp.float32, -bound, bound)
        return w, b

    wemb, bemb = linear(ks[0], ks[1], CAT_F, CAT_F)
    w1, b1 = linear(ks[2], ks[3], NUM_F + CAT_F, H1)
    w2, b2 = linear(ks[4], ks[5], H1, H2)
    w3, b3 = linear(ks[6], ks[7], H2, OUT_F)
    return (wemb, bemb, w1, b1, w2, b2, w3, b3)


def reference_forward(x, cat_x, params):
    """Pure-JAX reference of the PyTorch forward (eval mode)."""
    wemb, bemb, w1, b1, w2, b2, w3, b3 = params
    hp = jax.lax.Precision.HIGHEST
    emb = jnp.tanh(jnp.dot(cat_x, wemb, precision=hp) + bemb)
    h = jnp.concatenate([x, emb], axis=1)
    a1 = jax.nn.leaky_relu(jnp.dot(h, w1, precision=hp) + b1, NEG_SLOPE)
    a2 = jax.nn.leaky_relu(jnp.dot(a1, w2, precision=hp) + b2, NEG_SLOPE)
    return jnp.dot(a2, w3, precision=hp) + b3


if __name__ == "__main__":
    key = jax.random.PRNGKey(0)
    kp, kx, kc = jax.random.split(key, 3)

    params = init_params(kp)
    packed = pack_params(params)          # pre-pack once, reused across calls

    B = 16
    x = jax.random.normal(kx, (B, NUM_F), dtype=jnp.float32)
    occ = jax.random.randint(kc, (B,), 0, CAT_F)
    cat_x = jax.nn.one_hot(occ, CAT_F, dtype=jnp.float32)   # get_dummies-style one-hot

    logits = adults_classifier_embeddings_forward(x, cat_x, packed)
    logits = jax.block_until_ready(logits)

    ref = reference_forward(x, cat_x, params)

    assert logits.shape == (B, OUT_F)
    assert logits.dtype == jnp.float32
    assert bool(jnp.all(jnp.isfinite(logits)))
    assert bool(jnp.allclose(logits, ref, atol=2e-3, rtol=2e-3))
    print("KERNEL_OK")
</pallas_src>

<mosaic_0001>
module attributes {stable_mosaic.version = 11 : i64} {
  func.func @adults_kernel(%arg0: i32, %arg1: memref<8x32xf32, #tpu.memory_space<vmem>>, %arg2: memref<32x128xf32, #tpu.memory_space<vmem>>, %arg3: memref<1x128xf32, #tpu.memory_space<vmem>>, %arg4: memref<32x128xf32, #tpu.memory_space<vmem>>, %arg5: memref<128x128xf32, #tpu.memory_space<vmem>>, %arg6: memref<1x128xf32, #tpu.memory_space<vmem>>, %arg7: memref<128x128xf32, #tpu.memory_space<vmem>>, %arg8: memref<1x128xf32, #tpu.memory_space<vmem>>, %arg9: memref<1x128xf32, #tpu.memory_space<vmem>>, %arg10: memref<1x1xf32, #tpu.memory_space<vmem>>, %arg11: memref<8x1xf32, #tpu.memory_space<vmem>>) attributes {dimension_semantics = [#tpu.dimension_semantics<parallel>], iteration_bounds = array<i64: 2>, scalar_prefetch = 0 : i64, scratch_operands = 0 : i64, tpu.core_type = #tpu.core_type<tc>, window_params = [{transform_indices = @transform_0, window_bounds = array<i64: 8, 32>}, {pipeline_mode = #tpu.pipeline_mode<synchronous>, transform_indices = @transform_1, window_bounds = array<i64: 32, 128>}, {pipeline_mode = #tpu.pipeline_mode<synchronous>, transform_indices = @transform_2, window_bounds = array<i64: 1, 128>}, {pipeline_mode = #tpu.pipeline_mode<synchronous>, transform_indices = @transform_3, window_bounds = array<i64: 32, 128>}, {pipeline_mode = #tpu.pipeline_mode<synchronous>, transform_indices = @transform_4, window_bounds = array<i64: 128, 128>}, {pipeline_mode = #tpu.pipeline_mode<synchronous>, transform_indices = @transform_5, window_bounds = array<i64: 1, 128>}, {pipeline_mode = #tpu.pipeline_mode<synchronous>, transform_indices = @transform_6, window_bounds = array<i64: 128, 128>}, {pipeline_mode = #tpu.pipeline_mode<synchronous>, transform_indices = @transform_7, window_bounds = array<i64: 1, 128>}, {pipeline_mode = #tpu.pipeline_mode<synchronous>, transform_indices = @transform_8, window_bounds = array<i64: 1, 128>}, {pipeline_mode = #tpu.pipeline_mode<synchronous>, transform_indices = @transform_9, window_bounds = array<i64: 1, 1>}, {transform_indices = @transform_10, window_bounds = array<i64: 8, 1>}]} {
    %c0 = arith.constant 0 : index
    %c0_0 = arith.constant 0 : index
    %0 = vector.load %arg1[%c0, %c0_0] : memref<8x32xf32, #tpu.memory_space<vmem>>, vector<8x32xf32>
    %c0_1 = arith.constant 0 : index
    %c0_2 = arith.constant 0 : index
    %1 = vector.load %arg2[%c0_1, %c0_2] : memref<32x128xf32, #tpu.memory_space<vmem>>, vector<32x128xf32>
    %cst = arith.constant dense<0.000000e+00> : vector<8x128xf32>
    %2 = tpu.matmul %0, %1, %cst {dimension_numbers = #tpu.dot_dimension_numbers<[1], [0], [0], [1], [0, 0, 1, 1], [], []>} : vector<8x32xf32>, vector<32x128xf32>, vector<8x128xf32> -> vector<8x128xf32>
    %c0_3 = arith.constant 0 : index
    %c0_4 = arith.constant 0 : index
    %3 = vector.load %arg3[%c0_3, %c0_4] : memref<1x128xf32, #tpu.memory_space<vmem>>, vector<1x128xf32>
    %4 = vector.broadcast %3 : vector<1x128xf32> to vector<8x128xf32>
    %5 = arith.addf %2, %4 : vector<8x128xf32>
    %6 = math.tanh %5 : vector<8x128xf32>
    %c0_5 = arith.constant 0 : index
    %c0_6 = arith.constant 0 : index
    %7 = vector.load %arg4[%c0_5, %c0_6] : memref<32x128xf32, #tpu.memory_space<vmem>>, vector<32x128xf32>
    %cst_7 = arith.constant dense<0.000000e+00> : vector<8x128xf32>
    %8 = tpu.matmul %0, %7, %cst_7 {dimension_numbers = #tpu.dot_dimension_numbers<[1], [0], [0], [1], [0, 0, 1, 1], [], []>} : vector<8x32xf32>, vector<32x128xf32>, vector<8x128xf32> -> vector<8x128xf32>
    %c0_8 = arith.constant 0 : index
    %c0_9 = arith.constant 0 : index
    %9 = vector.load %arg5[%c0_8, %c0_9] : memref<128x128xf32, #tpu.memory_space<vmem>>, vector<128x128xf32>
    %cst_10 = arith.constant dense<0.000000e+00> : vector<8x128xf32>
    %10 = tpu.matmul %6, %9, %cst_10 {dimension_numbers = #tpu.dot_dimension_numbers<[1], [0], [0], [1], [0, 0, 1, 1], [], []>} : vector<8x128xf32>, vector<128x128xf32>, vector<8x128xf32> -> vector<8x128xf32>
    %11 = arith.addf %8, %10 : vector<8x128xf32>
    %c0_11 = arith.constant 0 : index
    %c0_12 = arith.constant 0 : index
    %12 = vector.load %arg6[%c0_11, %c0_12] : memref<1x128xf32, #tpu.memory_space<vmem>>, vector<1x128xf32>
    %13 = vector.broadcast %12 : vector<1x128xf32> to vector<8x128xf32>
    %14 = arith.addf %11, %13 : vector<8x128xf32>
    %cst_13 = arith.constant 0.000000e+00 : f32
    %15 = vector.broadcast %cst_13 : f32 to vector<8x128xf32>
    %16 = arith.cmpf ogt, %14, %15 : vector<8x128xf32>
    %cst_14 = arith.constant 0.00999999977 : f32
    %17 = vector.broadcast %cst_14 : f32 to vector<8x128xf32>
    %18 = arith.mulf %17, %14 : vector<8x128xf32>
    %19 = arith.select %16, %14, %18 : vector<8x128xi1>, vector<8x128xf32>
    %c0_15 = arith.constant 0 : index
    %c0_16 = arith.constant 0 : index
    %20 = vector.load %arg7[%c0_15, %c0_16] : memref<128x128xf32, #tpu.memory_space<vmem>>, vector<128x128xf32>
    %cst_17 = arith.constant dense<0.000000e+00> : vector<8x128xf32>
    %21 = tpu.matmul %19, %20, %cst_17 {dimension_numbers = #tpu.dot_dimension_numbers<[1], [0], [0], [1], [0, 0, 1, 1], [], []>} : vector<8x128xf32>, vector<128x128xf32>, vector<8x128xf32> -> vector<8x128xf32>
    %c0_18 = arith.constant 0 : index
    %c0_19 = arith.constant 0 : index
    %22 = vector.load %arg8[%c0_18, %c0_19] : memref<1x128xf32, #tpu.memory_space<vmem>>, vector<1x128xf32>
    %23 = vector.broadcast %22 : vector<1x128xf32> to vector<8x128xf32>
    %24 = arith.addf %21, %23 : vector<8x128xf32>
    %cst_20 = arith.constant 0.000000e+00 : f32
    %25 = vector.broadcast %cst_20 : f32 to vector<8x128xf32>
    %26 = arith.cmpf ogt, %24, %25 : vector<8x128xf32>
    %cst_21 = arith.constant 0.00999999977 : f32
    %27 = vector.broadcast %cst_21 : f32 to vector<8x128xf32>
    %28 = arith.mulf %27, %24 : vector<8x128xf32>
    %29 = arith.select %26, %24, %28 : vector<8x128xi1>, vector<8x128xf32>
    %c0_22 = arith.constant 0 : index
    %c0_23 = arith.constant 0 : index
    %30 = vector.load %arg9[%c0_22, %c0_23] : memref<1x128xf32, #tpu.memory_space<vmem>>, vector<1x128xf32>
    %31 = vector.broadcast %30 : vector<1x128xf32> to vector<8x128xf32>
    %32 = arith.mulf %29, %31 : vector<8x128xf32>
    %cst_24 = arith.constant dense<0.000000e+00> : vector<8xf32>
    %33 = vector.multi_reduction <add>, %32, %cst_24 [1] : vector<8x128xf32> to vector<8xf32>
    %34 = vector.shape_cast %33 : vector<8xf32> to vector<8x1xf32>
    %c0_25 = arith.constant 0 : index
    %c0_26 = arith.constant 0 : index
    %35 = vector.load %arg10[%c0_25, %c0_26] : memref<1x1xf32, #tpu.memory_space<vmem>>, vector<1x1xf32>
    %36 = vector.broadcast %35 : vector<1x1xf32> to vector<8x1xf32>
    %37 = arith.addf %34, %36 : vector<8x1xf32>
    %c0_27 = arith.constant 0 : index
    %c0_28 = arith.constant 0 : index
    %38 = vector.load %arg11[%c0_27, %c0_28] : memref<8x1xf32, #tpu.memory_space<vmem>>, vector<8x1xf32>
    tpu.vector_store %arg11[%c0_27, %c0_28], %37 {strides = array<i32>} : memref<8x1xf32, #tpu.memory_space<vmem>>, vector<8x1xf32>,
    return
  }
  func.func @transform_0(%arg0: i32) -> (i32, i32) {
    %c0_i32 = arith.constant 0 : i32
    %c0_i32_0 = arith.constant 0 : i32
    return %arg0, %c0_i32 : i32, i32
  }
  func.func @transform_1(%arg0: i32) -> (i32, i32) {
    %c0_i32 = arith.constant 0 : i32
    %c0_i32_0 = arith.constant 0 : i32
    %c0_i32_1 = arith.constant 0 : i32
    return %c0_i32, %c0_i32_0 : i32, i32
  }
  func.func @transform_2(%arg0: i32) -> (i32, i32) {
    %c0_i32 = arith.constant 0 : i32
    %c0_i32_0 = arith.constant 0 : i32
    %c0_i32_1 = arith.constant 0 : i32
    return %c0_i32, %c0_i32_0 : i32, i32
  }
  func.func @transform_3(%arg0: i32) -> (i32, i32) {
    %c0_i32 = arith.constant 0 : i32
    %c0_i32_0 = arith.constant 0 : i32
    %c0_i32_1 = arith.constant 0 : i32
    return %c0_i32, %c0_i32_0 : i32, i32
  }
  func.func @transform_4(%arg0: i32) -> (i32, i32) {
    %c0_i32 = arith.constant 0 : i32
    %c0_i32_0 = arith.constant 0 : i32
    %c0_i32_1 = arith.constant 0 : i32
    return %c0_i32, %c0_i32_0 : i32, i32
  }
  func.func @transform_5(%arg0: i32) -> (i32, i32) {
    %c0_i32 = arith.constant 0 : i32
    %c0_i32_0 = arith.constant 0 : i32
    %c0_i32_1 = arith.constant 0 : i32
    return %c0_i32, %c0_i32_0 : i32, i32
  }
  func.func @transform_6(%arg0: i32) -> (i32, i32) {
    %c0_i32 = arith.constant 0 : i32
    %c0_i32_0 = arith.constant 0 : i32
    %c0_i32_1 = arith.constant 0 : i32
    return %c0_i32, %c0_i32_0 : i32, i32
  }
  func.func @transform_7(%arg0: i32) -> (i32, i32) {
    %c0_i32 = arith.constant 0 : i32
    %c0_i32_0 = arith.constant 0 : i32
    %c0_i32_1 = arith.constant 0 : i32
    return %c0_i32, %c0_i32_0 : i32, i32
  }
  func.func @transform_8(%arg0: i32) -> (i32, i32) {
    %c0_i32 = arith.constant 0 : i32
    %c0_i32_0 = arith.constant 0 : i32
    %c0_i32_1 = arith.constant 0 : i32
    return %c0_i32, %c0_i32_0 : i32, i32
  }
  func.func @transform_9(%arg0: i32) -> (i32, i32) {
    %c0_i32 = arith.constant 0 : i32
    %c0_i32_0 = arith.constant 0 : i32
    %c0_i32_1 = arith.constant 0 : i32
    return %c0_i32, %c0_i32_0 : i32, i32
  }
  func.func @transform_10(%arg0: i32) -> (i32, i32) {
    %c0_i32 = arith.constant 0 : i32
    %c0_i32_0 = arith.constant 0 : i32
    return %arg0, %c0_i32 : i32, i32
  }
}

</mosaic_0001>

<llo_original>
// kernel: adults_classifier_embeddings_forward.1
$region0: #{adults_classifier_embeddings_forward.1}
  #allocation0 [shape = 'u32[]', space=smem, size = 0x4, offset = 0x4, fixed_abs, tag = 'smem constant byte address 0x4 - core index']
  #allocation1 [shape = 'u32[144,128]{1,0:T(1,128)}', space=vmem, size = 0x12000, scoped, tag = 'internal scratch']
  #allocation2 [shape = 'f32[1,1]{1,0:T(1,128)S(1)}', space=vmem, size = 0x200, scoped, tag = 'scoped memory for adults_classifier_embeddings_forward.1']
  %s0 = inlined_call_operand.vmem [shape: f32[16,32], index: 0, kind: input, shape index: {}]
  %s1 = inlined_call_operand.hbm [shape: f32[32,128], index: 1, kind: input, shape index: {}]
  %s2 = inlined_call_operand.vmem [shape: f32[1,128], index: 2, kind: input, shape index: {}]
  %s3 = inlined_call_operand.hbm [shape: f32[32,128], index: 3, kind: input, shape index: {}]
  %s4 = inlined_call_operand.vmem [shape: f32[128,128], index: 4, kind: input, shape index: {}]
  %s5 = inlined_call_operand.vmem [shape: f32[1,128], index: 5, kind: input, shape index: {}]
  %s6 = inlined_call_operand.hbm [shape: f32[128,128], index: 6, kind: input, shape index: {}]
  %s7 = inlined_call_operand.vmem [shape: f32[1,128], index: 7, kind: input, shape index: {}]
  %s8 = inlined_call_operand.vmem [shape: f32[1,128], index: 8, kind: input, shape index: {}]
  %s9 = inlined_call_operand.<no memory space> [shape: f32[1,1], index: 9, kind: input, shape index: {}]
  %s10 = inlined_call_operand.vmem [shape: f32[16,1], index: 10, kind: output, shape index: {}]
  %s11 = sld [smem:[#allocation0]]
  $region85: #{adults_classifier_embeddings_forward.1} parent=0
    _
  %s13 = ssub.s32 1, %s11
  %s14 = scalar_select 0, %s13, %s11
  %v15 = vstv %s9
  %16 = vst [vmem:[#allocation2] sm:$0x1] %v15
  $region1: #{adults_classifier_embeddings_forward.1} parent=0
    #allocation3 [shape = 'u8[16384]{0}', space=vmem, size = 0x4000, scoped, tag = 'input window, operand 1, single buffered']
    #allocation4 [shape = 's32[2]{0}', space=sflag, size = 0x8, scoped, tag = 'scoped memory for adults_classifier_embeddings_forward.1']
    #allocation5 [shape = 'u8[16384]{0}', space=vmem, size = 0x4000, scoped, tag = 'input window, operand 3, single buffered']
    #allocation6 [shape = 's32[1]{0}', space=sflag, size = 0x4, scoped, tag = 'scoped memory for adults_classifier_embeddings_forward.1']
    #allocation7 [shape = 'u8[65536]{0}', space=vmem, size = 0x10000, scoped, tag = 'input window, operand 6, single buffered']
    %17 = vsyncpa [#allocation4], 0
    %18 = vsyncpa [#allocation6], 0
    loop: start=0, step=1, limit=4
    $region2: #{adults_classifier_embeddings_forward.1} parent=1 // loop_pre_header
      _
    $region3: #{adults_classifier_embeddings_forward.1} parent=1 // loop_header
      %s20 = sphi 0, %s24
      %p21 = scmp.ge.s32.totalorder %s20, 4
      %s30 = sphi 0, %s32
      %s33 = sphi 0, %s30
      %s34 = sphi 0, %s33
      %s50 = sphi 0, %s34
      %s54 = sphi 0, %s54
      %s56 = sphi 0, %s54
      %s57 = sphi 0, %s56
      %s71 = sphi 0, %s57
      %s75 = sphi 0, %s75
      %s77 = sphi 0, %s75
      %s78 = sphi 0, %s77
      %s92 = sphi 0, %s78
      %s96 = sphi 0, %s96
      %s98 = sphi 0, %s96
      %s99 = sphi 0, %s98
      %s113 = sphi 0, %s99
      %s117 = sphi 0, %s117
      %s119 = sphi 0, %s117
      %s120 = sphi 0, %s119
      %s134 = sphi 0, %s120
      %s138 = sphi 0, %s138
      %s140 = sphi 0, %s138
      %s141 = sphi 0, %s140
      %s155 = sphi 0, %s141
      %s159 = sphi 0, %s159
      %s161 = sphi 0, %s159
      %s162 = sphi 0, %s161
      %s176 = sphi 0, %s162
      %s180 = sphi 0, %s180
      %s182 = sphi 0, %s180
      %s183 = sphi 0, %s182
      %s197 = sphi 0, %s183
      %s201 = sphi 0, %s201
      %s203 = sphi 0, %s201
      %s204 = sphi 0, %s203
      %s218 = sphi 0, %s204
      %s222 = sphi 0, %s222
      %s224 = sphi 0, %s222
      %s225 = sphi 0, %s224
      %s239 = sphi 0, %s225
      %s245 = sphi 0, %s247
      %s248 = sphi 0, %s245
      %s249 = sphi 0, %s248
      %s265 = sphi 0, %s249
    $region4: #{adults_classifier_embeddings_forward.1} parent=1 // loop_header_branch
      %23 = sbr.rel (%p21) target = $region8
    $region5: #{adults_classifier_embeddings_forward.1} parent=1 // loop_body
      %s25 = ssub.s32 %s20, 1
      %s26 = ssub.s32 %s20, 2
      %s27 = sadd.s32 %s20, 1
      %s28 = ssub.s32 %s20, %s27
      %p29 = scmp.eq.s32.totalorder %s28, 0
      %s31 = sadd.s32 %s30, 1
      %s32 = scalar_select %p29, %s30, %s31
      %p35 = pneg %p29
      %p36 = scmp.eq.s32.totalorder %s20, 1
      %p37 = por %p35, %p36
      %p38 = scmp.ne.s32.totalorder %s30, %s33
      %p39 = scmp.eq.s32.totalorder %s20, 0
      %p40 = por %p38, %p39
      %p41 = scmp.ne.s32.totalorder %s30, %s33
      %p42 = scmp.eq.s32.totalorder %s25, 1
      %p43 = por %p41, %p42
      %p44 = scmp.ne.s32.totalorder %s33, %s34
      %p45 = scmp.eq.s32.totalorder %s25, 0
      %p46 = por %p44, %p45
      %p47 = scmp.ne.s32.totalorder %s33, %s34
      %p48 = scmp.eq.s32.totalorder %s26, 1
      %p49 = por %p47, %p48
      %p51 = scmp.ne.s32.totalorder %s34, %s50
      %p52 = scmp.eq.s32.totalorder %s26, 0
      %p53 = por %p51, %p52
      %s55 = sadd.s32 %s54, 1
      %p58 = scmp.eq.s32.totalorder %s20, 1
      %p59 = scmp.ne.s32.totalorder %s54, %s56
      %p60 = scmp.eq.s32.totalorder %s20, 0
      %p61 = por %p59, %p60
      %p62 = scmp.ne.s32.totalorder %s54, %s56
      %p63 = scmp.eq.s32.totalorder %s25, 1
      %p64 = por %p62, %p63
      %p65 = scmp.ne.s32.totalorder %s56, %s57
      %p66 = scmp.eq.s32.totalorder %s25, 0
      %p67 = por %p65, %p66
      %p68 = scmp.ne.s32.totalorder %s56, %s57
      %p69 = scmp.eq.s32.totalorder %s26, 1
      %p70 = por %p68, %p69
      %p72 = scmp.ne.s32.totalorder %s57, %s71
      %p73 = scmp.eq.s32.totalorder %s26, 0
      %p74 = por %p72, %p73
      %s76 = sadd.s32 %s75, 1
      %p79 = scmp.eq.s32.totalorder %s20, 1
      %p80 = scmp.ne.s32.totalorder %s75, %s77
      %p81 = scmp.eq.s32.totalorder %s20, 0
      %p82 = por %p80, %p81
      %p83 = scmp.ne.s32.totalorder %s75, %s77
      %p84 = scmp.eq.s32.totalorder %s25, 1
      %p85 = por %p83, %p84
      %p86 = scmp.ne.s32.totalorder %s77, %s78
      %p87 = scmp.eq.s32.totalorder %s25, 0
      %p88 = por %p86, %p87
      %p89 = scmp.ne.s32.totalorder %s77, %s78
      %p90 = scmp.eq.s32.totalorder %s26, 1
      %p91 = por %p89, %p90
      %p93 = scmp.ne.s32.totalorder %s78, %s92
      %p94 = scmp.eq.s32.totalorder %s26, 0
      %p95 = por %p93, %p94
      %s97 = sadd.s32 %s96, 1
      %p100 = scmp.eq.s32.totalorder %s20, 1
      %p101 = scmp.ne.s32.totalorder %s96, %s98
      %p102 = scmp.eq.s32.totalorder %s20, 0
      %p103 = por %p101, %p102
      %p104 = scmp.ne.s32.totalorder %s96, %s98
      %p105 = scmp.eq.s32.totalorder %s25, 1
      %p106 = por %p104, %p105
      %p107 = scmp.ne.s32.totalorder %s98, %s99
      %p108 = scmp.eq.s32.totalorder %s25, 0
      %p109 = por %p107, %p108
      %p110 = scmp.ne.s32.totalorder %s98, %s99
      %p111 = scmp.eq.s32.totalorder %s26, 1
      %p112 = por %p110, %p111
      %p114 = scmp.ne.s32.totalorder %s99, %s113
      %p115 = scmp.eq.s32.totalorder %s26, 0
      %p116 = por %p114, %p115
      %s118 = sadd.s32 %s117, 1
      %p121 = scmp.eq.s32.totalorder %s20, 1
      %p122 = scmp.ne.s32.totalorder %s117, %s119
      %p123 = scmp.eq.s32.totalorder %s20, 0
      %p124 = por %p122, %p123
      %p125 = scmp.ne.s32.totalorder %s117, %s119
      %p126 = scmp.eq.s32.totalorder %s25, 1
      %p127 = por %p125, %p126
      %p128 = scmp.ne.s32.totalorder %s119, %s120
      %p129 = scmp.eq.s32.totalorder %s25, 0
      %p130 = por %p128, %p129
      %p131 = scmp.ne.s32.totalorder %s119, %s120
      %p132 = scmp.eq.s32.totalorder %s26, 1
      %p133 = por %p131, %p132
      %p135 = scmp.ne.s32.totalorder %s120, %s134
      %p136 = scmp.eq.s32.totalorder %s26, 0
      %p137 = por %p135, %p136
      %s139 = sadd.s32 %s138, 1
      %p142 = scmp.eq.s32.totalorder %s20, 1
      %p143 = scmp.ne.s32.totalorder %s138, %s140
      %p144 = scmp.eq.s32.totalorder %s20, 0
      %p145 = por %p143, %p144
      %p146 = scmp.ne.s32.totalorder %s138, %s140
      %p147 = scmp.eq.s32.totalorder %s25, 1
      %p148 = por %p146, %p147
      %p149 = scmp.ne.s32.totalorder %s140, %s141
      %p150 = scmp.eq.s32.totalorder %s25, 0
      %p151 = por %p149, %p150
      %p152 = scmp.ne.s32.totalorder %s140, %s141
      %p153 = scmp.eq.s32.totalorder %s26, 1
      %p154 = por %p152, %p153
      %p156 = scmp.ne.s32.totalorder %s141, %s155
      %p157 = scmp.eq.s32.totalorder %s26, 0
      %p158 = por %p156, %p157
      %s160 = sadd.s32 %s159, 1
      %p163 = scmp.eq.s32.totalorder %s20, 1
      %p164 = scmp.ne.s32.totalorder %s159, %s161
      %p165 = scmp.eq.s32.totalorder %s20, 0
      %p166 = por %p164, %p165
      %p167 = scmp.ne.s32.totalorder %s159, %s161
      %p168 = scmp.eq.s32.totalorder %s25, 1
      %p169 = por %p167, %p168
      %p170 = scmp.ne.s32.totalorder %s161, %s162
      %p171 = scmp.eq.s32.totalorder %s25, 0
      %p172 = por %p170, %p171
      %p173 = scmp.ne.s32.totalorder %s161, %s162
      %p174 = scmp.eq.s32.totalorder %s26, 1
      %p175 = por %p173, %p174
      %p177 = scmp.ne.s32.totalorder %s162, %s176
      %p178 = scmp.eq.s32.totalorder %s26, 0
      %p179 = por %p177, %p178
      %s181 = sadd.s32 %s180, 1
      %p184 = scmp.eq.s32.totalorder %s20, 1
      %p185 = scmp.ne.s32.totalorder %s180, %s182
      %p186 = scmp.eq.s32.totalorder %s20, 0
      %p187 = por %p185, %p186
      %p188 = scmp.ne.s32.totalorder %s180, %s182
      %p189 = scmp.eq.s32.totalorder %s25, 1
      %p190 = por %p188, %p189
      %p191 = scmp.ne.s32.totalorder %s182, %s183
      %p192 = scmp.eq.s32.totalorder %s25, 0
      %p193 = por %p191, %p192
      %p194 = scmp.ne.s32.totalorder %s182, %s183
      %p195 = scmp.eq.s32.totalorder %s26, 1
      %p196 = por %p194, %p195
      %p198 = scmp.ne.s32.totalorder %s183, %s197
      %p199 = scmp.eq.s32.totalorder %s26, 0
      %p200 = por %p198, %p199
      %s202 = sadd.s32 %s201, 1
      %p205 = scmp.eq.s32.totalorder %s20, 1
      %p206 = scmp.ne.s32.totalorder %s201, %s203
      %p207 = scmp.eq.s32.totalorder %s20, 0
      %p208 = por %p206, %p207
      %p209 = scmp.ne.s32.totalorder %s201, %s203
      %p210 = scmp.eq.s32.totalorder %s25, 1
      %p211 = por %p209, %p210
      %p212 = scmp.ne.s32.totalorder %s203, %s204
      %p213 = scmp.eq.s32.totalorder %s25, 0
      %p214 = por %p212, %p213
      %p215 = scmp.ne.s32.totalorder %s203, %s204
      %p216 = scmp.eq.s32.totalorder %s26, 1
      %p217 = por %p215, %p216
      %p219 = scmp.ne.s32.totalorder %s204, %s218
      %p220 = scmp.eq.s32.totalorder %s26, 0
      %p221 = por %p219, %p220
      %s223 = sadd.s32 %s222, 1
      %p226 = scmp.eq.s32.totalorder %s20, 1
      %p227 = scmp.ne.s32.totalorder %s222, %s224
      %p228 = scmp.eq.s32.totalorder %s20, 0
      %p229 = por %p227, %p228
      %p230 = scmp.ne.s32.totalorder %s222, %s224
      %p231 = scmp.eq.s32.totalorder %s25, 1
      %p232 = por %p230, %p231
      %p233 = scmp.ne.s32.totalorder %s224, %s225
      %p234 = scmp.eq.s32.totalorder %s25, 0
      %p235 = por %p233, %p234
      %p236 = scmp.ne.s32.totalorder %s224, %s225
      %p237 = scmp.eq.s32.totalorder %s26, 1
      %p238 = por %p236, %p237
      %p240 = scmp.ne.s32.totalorder %s225, %s239
      %p241 = scmp.eq.s32.totalorder %s26, 0
      %p242 = por %p240, %p241
      %s243 = ssub.s32 %s20, %s27
      %p244 = scmp.eq.s32.totalorder %s243, 0
      %s246 = sadd.s32 %s245, 1
      %s247 = scalar_select %p244, %s245, %s246
      %p250 = pneg %p244
      %p251 = scmp.eq.s32.totalorder %s20, 1
      %p252 = por %p250, %p251
      %p253 = scmp.ne.s32.totalorder %s245, %s248
      %p254 = scmp.eq.s32.totalorder %s20, 0
      %p255 = por %p253, %p254
      %p256 = scmp.ne.s32.totalorder %s245, %s248
      %p257 = scmp.eq.s32.totalorder %s25, 1
      %p258 = por %p256, %p257
      %p259 = scmp.ne.s32.totalorder %s248, %s249
      %p260 = scmp.eq.s32.totalorder %s25, 0
      %p261 = por %p259, %p260
      %p262 = scmp.ne.s32.totalorder %s248, %s249
      %p263 = scmp.eq.s32.totalorder %s26, 1
      %p264 = por %p262, %p263
      %p266 = scmp.ne.s32.totalorder %s249, %s265
      %p267 = scmp.eq.s32.totalorder %s26, 0
      %p268 = por %p266, %p267
      %p269 = scmp.le.s32.totalorder 1, %s20
      %p270 = scmp.lt.s32.totalorder %s20, 3
      %p271 = pnand %p269, %p270
      %p272 = pneg %p271
      // Predicated region
      $region9: #{adults_classifier_embeddings_forward.1} parent=5 // pred_check
        _
      $region10: #{adults_classifier_embeddings_forward.1} parent=5 // pred_check_branch
        %274 = sbr.rel (%p271) target = $region12
      $region11: #{adults_classifier_embeddings_forward.1} parent=5 // pred_region
        %s275 = ssub.s32 %s20, 1
        // Predicated region
        $region13: #{adults_classifier_embeddings_forward.1} parent=11 // pred_check
          %p276 = pneg %p67
        $region14: #{adults_classifier_embeddings_forward.1} parent=11 // pred_check_branch
          %278 = sbr.rel (%p276) target = $region16
        $region15: #{adults_classifier_embeddings_forward.1} parent=11 // pred_region
          %s280 = ssub.s32 512, 512
          %281 = vsyncadd [#allocation4], %s280
          %s282 = sshll.u32 [#allocation3], 4
          %s283 = int_to_ptr.vmem [resolvable:$true] %s282
          %288 = dma.hbm_to_vmem [thread:$0]  %s1, 512, %s283, [#allocation4], 128, 128, 8
        $region16: #{adults_classifier_embeddings_forward.1} parent=11 // pred_fallthru
          _
        // Predicated region
        $region17: #{adults_classifier_embeddings_forward.1} parent=11 // pred_check
          %p289 = pneg %p88
        $region18: #{adults_classifier_embeddings_forward.1} parent=11 // pred_check_branch
          %291 = sbr.rel (%p289) target = $region20
        $region19: #{adults_classifier_embeddings_forward.1} parent=11 // pred_region
          _
        $region20: #{adults_classifier_embeddings_forward.1} parent=11 // pred_fallthru
          _
        // Predicated region
        $region21: #{adults_classifier_embeddings_forward.1} parent=11 // pred_check
          %p292 = pneg %p109
        $region22: #{adults_classifier_embeddings_forward.1} parent=11 // pred_check_branch
          %294 = sbr.rel (%p292) target = $region24
        $region23: #{adults_classifier_embeddings_forward.1} parent=11 // pred_region
          %s296 = ssub.s32 512, 512
          %297 = vsyncadd [#allocation6], %s296
          %s298 = sshll.u32 [#allocation5], 4
          %s299 = int_to_ptr.vmem [resolvable:$true] %s298
          %304 = dma.hbm_to_vmem [thread:$0]  %s3, 512, %s299, [#allocation6], 128, 128, 8
        $region24: #{adults_classifier_embeddings_forward.1} parent=11 // pred_fallthru
          _
        // Predicated region
        $region25: #{adults_classifier_embeddings_forward.1} parent=11 // pred_check
          %p305 = pneg %p130
        $region26: #{adults_classifier_embeddings_forward.1} parent=11 // pred_check_branch
          %307 = sbr.rel (%p305) target = $region28
        $region27: #{adults_classifier_embeddings_forward.1} parent=11 // pred_region
          _
        $region28: #{adults_classifier_embeddings_forward.1} parent=11 // pred_fallthru
          _
        // Predicated region
        $region29: #{adults_classifier_embeddings_forward.1} parent=11 // pred_check
          %p308 = pneg %p151
        $region30: #{adults_classifier_embeddings_forward.1} parent=11 // pred_check_branch
          %310 = sbr.rel (%p308) target = $region32
        $region31: #{adults_classifier_embeddings_forward.1} parent=11 // pred_region
          _
        $region32: #{adults_classifier_embeddings_forward.1} parent=11 // pred_fallthru
          _
        // Predicated region
        $region33: #{adults_classifier_embeddings_forward.1} parent=11 // pred_check
          %p311 = pneg %p172
        $region34: #{adults_classifier_embeddings_forward.1} parent=11 // pred_check_branch
          %313 = sbr.rel (%p311) target = $region36
        $region35: #{adults_classifier_embeddings_forward.1} parent=11 // pred_region
          %s315 = ssub.s32 2048, 2048
          %316 = vsyncadd [#allocation6], %s315
          %s317 = sshll.u32 [#allocation7], 4
          %s318 = int_to_ptr.vmem [resolvable:$true] %s317
          %323 = dma.hbm_to_vmem [thread:$0]  %s6, 2048, %s318, [#allocation6], 128, 128, 8
        $region36: #{adults_classifier_embeddings_forward.1} parent=11 // pred_fallthru
          _
        // Predicated region
        $region37: #{adults_classifier_embeddings_forward.1} parent=11 // pred_check
          %p324 = pneg %p193
        $region38: #{adults_classifier_embeddings_forward.1} parent=11 // pred_check_branch
          %326 = sbr.rel (%p324) target = $region40
        $region39: #{adults_classifier_embeddings_forward.1} parent=11 // pred_region
          _
        $region40: #{adults_classifier_embeddings_forward.1} parent=11 // pred_fallthru
          _
        // Predicated region
        $region41: #{adults_classifier_embeddings_forward.1} parent=11 // pred_check
          %p327 = pneg %p214
        $region42: #{adults_classifier_embeddings_forward.1} parent=11 // pred_check_branch
          %329 = sbr.rel (%p327) target = $region44
        $region43: #{adults_classifier_embeddings_forward.1} parent=11 // pred_region
          _
        $region44: #{adults_classifier_embeddings_forward.1} parent=11 // pred_fallthru
          _
        // Predicated region
        $region45: #{adults_classifier_embeddings_forward.1} parent=11 // pred_check
          %p330 = pneg %p235
        $region46: #{adults_classifier_embeddings_forward.1} parent=11 // pred_check_branch
          %332 = sbr.rel (%p330) target = $region48
        $region47: #{adults_classifier_embeddings_forward.1} parent=11 // pred_region
          _
        $region48: #{adults_classifier_embeddings_forward.1} parent=11 // pred_fallthru
          _
      $region12: #{adults_classifier_embeddings_forward.1} parent=5 // pred_fallthru
        _
      %p333 = scmp.lt.s32.totalorder %s20, 2
      // Predicated region
      $region49: #{adults_classifier_embeddings_forward.1} parent=5 // pred_check
        %p334 = pneg %p333
      $region50: #{adults_classifier_embeddings_forward.1} parent=5 // pred_check_branch
        %336 = sbr.rel (%p334) target = $region52
      $region51: #{adults_classifier_embeddings_forward.1} parent=5 // pred_region
        // Predicated region
        $region53: #{adults_classifier_embeddings_forward.1} parent=51 // pred_check
          %p337 = pneg %p40
        $region54: #{adults_classifier_embeddings_forward.1} parent=51 // pred_check_branch
          %339 = sbr.rel (%p337) target = $region56
        $region55: #{adults_classifier_embeddings_forward.1} parent=51 // pred_region
          %p340 = scmp.lt.s32.totalorder %s20, 1
          %s341 = scalar_select %p340, %s20, 1
          %s342 = smul.addr %s341, 8
          %s343 = scalar_lea.vmem %s0, %s342
        $region56: #{adults_classifier_embeddings_forward.1} parent=51 // pred_fallthru
          _
      $region52: #{adults_classifier_embeddings_forward.1} parent=5 // pred_fallthru
        _
      %p344 = scmp.le.s32.totalorder 1, %s20
      %p345 = scmp.lt.s32.totalorder %s20, 3
      %p346 = pnand %p344, %p345
      %p347 = pneg %p346
      // Predicated region
      $region57: #{adults_classifier_embeddings_forward.1} parent=5 // pred_check
        _
      $region58: #{adults_classifier_embeddings_forward.1} parent=5 // pred_check_branch
        %349 = sbr.rel (%p346) target = $region60
      $region59: #{adults_classifier_embeddings_forward.1} parent=5 // pred_region
        %s350 = ssub.s32 %s20, 1
        // Predicated region
        $region61: #{adults_classifier_embeddings_forward.1} parent=59 // pred_check
          %p351 = pneg %p67
        $region62: #{adults_classifier_embeddings_forward.1} parent=59 // pred_check_branch
          %353 = sbr.rel (%p351) target = $region64
        $region63: #{adults_classifier_embeddings_forward.1} parent=59 // pred_region
          %354 = dma.done [#allocation4], 512
        $region64: #{adults_classifier_embeddings_forward.1} parent=59 // pred_fallthru
          _
        // Predicated region
        $region65: #{adults_classifier_embeddings_forward.1} parent=59 // pred_check
          %p355 = pneg %p109
        $region66: #{adults_classifier_embeddings_forward.1} parent=59 // pred_check_branch
          %357 = sbr.rel (%p355) target = $region68
        $region67: #{adults_classifier_embeddings_forward.1} parent=59 // pred_region
          %358 = dma.done [#allocation6], 512
        $region68: #{adults_classifier_embeddings_forward.1} parent=59 // pred_fallthru
          _
        // Predicated region
        $region69: #{adults_classifier_embeddings_forward.1} parent=59 // pred_check
          %p359 = pneg %p172
        $region70: #{adults_classifier_embeddings_forward.1} parent=59 // pred_check_branch
          %361 = sbr.rel (%p359) target = $region72
        $region71: #{adults_classifier_embeddings_forward.1} parent=59 // pred_region
          %362 = dma.done [#allocation6], 2048
        $region72: #{adults_classifier_embeddings_forward.1} parent=59 // pred_fallthru
          _
        %p363 = scmp.lt.s32.totalorder %s25, 1
        %s364 = scalar_select %p363, %s25, 1
        %s365 = smul.addr %s364, 8
        %s366 = scalar_lea.vmem %s0, %s365
        %p367 = pneg %p46
        %p368 = pneg %p43
        %p369 = pneg %p67
        %p370 = pneg %p64
        %p371 = pneg %p88
        %p372 = pneg %p85
        %p373 = pneg %p109
        %p374 = pneg %p106
        %p375 = pneg %p130
        %p376 = pneg %p127
        %p377 = pneg %p151
        %p378 = pneg %p148
        %p379 = pneg %p172
        %p380 = pneg %p169
        %p381 = pneg %p193
        %p382 = pneg %p190
        %p383 = pneg %p214
        %p384 = pneg %p211
        %p385 = pneg %p235
        %p386 = pneg %p232
        %p387 = pneg %p261
        %p388 = pneg %p258
        %p389 = scmp.lt.s32.totalorder %s25, 1
        %s390 = scalar_select %p389, %s25, 1
        %s391 = smul.addr %s390, 8
        %s392 = scalar_lea.vmem %s10, %s391
        %p393 = scmp.lt.s32.totalorder %s25, 1
        %s394 = scalar_select %p393, %s25, 1
        %s395 = smul.addr %s394, 8
        %s396 = scalar_lea.vmem %s0, %s395
        %p397 = scmp.lt.s32.totalorder %s25, 1
        %s398 = scalar_select %p397, %s25, 1
        %s399 = smul.addr %s398, 8
        %s400 = scalar_lea.vmem %s10, %s399
        %v401 = vld [vmem:[%s396] sm:$0xff]
        %v402 = vld [vmem:[#allocation3] sm:$0xff]
        %v403 = vld [vmem:[#allocation3 + $0x8] sm:$0xff]
        %v404 = vld [vmem:[#allocation3 + $0x10] sm:$0xff]
        %v405 = vld [vmem:[#allocation3 + $0x18] sm:$0xff]
        %v406 = vld [vmem:[%s2] sm:$0x1]
        %v408 = vlaneseq
        %v409 = vshrl.u32 %v408, 7
        %v410 = vsub.s32 0, %v409
        %v411 = vrot.slane %v406, %v410
        %vm413 = vcmask 261120
        %v415 = vsel %vm413, %v401, 0
        %417 = vmatprep.subr.mxu0 0.0
        %418 = vmatpush1.msra.mxu0 0.0
        %419 = vmatprep.subr.mxu0 0.0
        %420 = vmatpush1.msra.mxu0 0.0
        %421 = vmatprep.subr.mxu0 0.0
        %422 = vmatpush1.msra.mxu0 0.0
        %423 = vmatprep.subr.mxu0 0.0
        %424 = vmatpush1.msra.mxu0 0.0
        %425 = vmatprep.subr.mxu0 0.0
        %426 = vmatpush1.msra.mxu0 0.0
        %427 = vmatprep.subr.mxu0 0.0
        %428 = vmatpush1.msra.mxu0 0.0
        %429 = vmatprep.subr.mxu0 0.0
        %430 = vmatpush1.msra.mxu0 0.0
        %431 = vmatprep.subr.mxu0 0.0
        %432 = vmatpush1.msra.mxu0 0.0
        %433 = vmatprep.subr.mxu0 0.0
        %434 = vmatpush1.msra.mxu0 0.0
        %435 = vmatprep.subr.mxu0 0.0
        %436 = vmatpush1.msra.mxu0 0.0
        %437 = vmatprep.subr.mxu0 0.0
        %438 = vmatpush1.msra.mxu0 0.0
        %439 = vmatprep.subr.mxu0 0.0
        %440 = vmatpush1.msra.mxu0 0.0
        %441 = vmatprep.subr.mxu0 0.0
        %442 = vmatpush1.msra.mxu0 %v405
        %443 = vmatprep.subr.mxu0 0.0
        %444 = vmatpush1.msra.mxu0 %v404
        %445 = vmatprep.subr.mxu0 0.0
        %446 = vmatpush1.msra.mxu0 %v403
        %447 = vmatprep.subr.mxu0 0.0
        %448 = vmatpush1.msra.mxu0 %v402
        %449 = vmatprep.subr.mxu0 0.0
        %450 = vmatpush2.msra.mxu0 0.0
        %451 = vmatprep.subr.mxu0 0.0
        %452 = vmatpush2.msra.mxu0 0.0
        %453 = vmatprep.subr.mxu0 0.0
        %454 = vmatpush2.msra.mxu0 0.0
        %455 = vmatprep.subr.mxu0 0.0
        %456 = vmatpush2.msra.mxu0 0.0
        %457 = vmatprep.subr.mxu0 0.0
        %458 = vmatpush2.msra.mxu0 0.0
        %459 = vmatprep.subr.mxu0 0.0
        %460 = vmatpush2.msra.mxu0 0.0
        %461 = vmatprep.subr.mxu0 0.0
        %462 = vmatpush2.msra.mxu0 0.0
        %463 = vmatprep.subr.mxu0 0.0
        %464 = vmatpush2.msra.mxu0 0.0
        %465 = vmatprep.subr.mxu0 0.0
        %466 = vmatpush2.msra.mxu0 0.0
        %467 = vmatprep.subr.mxu0 0.0
        %468 = vmatpush2.msra.mxu0 0.0
        %469 = vmatprep.subr.mxu0 0.0
        %470 = vmatpush2.msra.mxu0 0.0
        %471 = vmatprep.subr.mxu0 0.0
        %472 = vmatpush2.msra.mxu0 0.0
        %473 = vmatprep.subr.mxu0 0.0
        %474 = vmatpush2.msra.mxu0 0.0
        %475 = vmatprep.subr.mxu0 0.0
        %476 = vmatpush2.msra.mxu0 0.0
        %477 = vmatprep.subr.mxu0 0.0
        %478 = vmatpush2.msra.mxu0 0.0
        %479 = vmatprep.subr.mxu0 0.0
        %480 = vmatpush2.msra.mxu0 0.0
        %481 = vmatprep.mubr.f32.mxu0 0.0
        %482 = vmatmul.mubr.f32.gmra.mxu0 %v415
        %v483 = vpop.f32.mrf.mxu0
        %v484 = vadd.f32 %v411, %v483
        %v485 = vpop.f32.mrf.mxu0
        %486 = vdwg.mxu0
        %v487 = vtanh.pop %v484
        %v488 = vld [vmem:[#allocation5] sm:$0xff]
        %v489 = vld [vmem:[#allocation5 + $0x8] sm:$0xff]
        %v490 = vld [vmem:[#allocation5 + $0x10] sm:$0xff]
        %v491 = vld [vmem:[#allocation5 + $0x18] sm:$0xff]
        %v492 = vld [vmem:[%s4] sm:$0xff]
        %v493 = vld [vmem:[%s4 + $0x8] sm:$0xff]
        %v494 = vld [vmem:[%s4 + $0x10] sm:$0xff]
        %v495 = vld [vmem:[%s4 + $0x18] sm:$0xff]
        %v496 = vld [vmem:[%s4 + $0x20] sm:$0xff]
        %v497 = vld [vmem:[%s4 + $0x28] sm:$0xff]
        %v498 = vld [vmem:[%s4 + $0x30] sm:$0xff]
        %v499 = vld [vmem:[%s4 + $0x38] sm:$0xff]
        %v500 = vld [vmem:[%s4 + $0x40] sm:$0xff]
        %v501 = vld [vmem:[%s4 + $0x48] sm:$0xff]
        %v502 = vld [vmem:[%s4 + $0x50] sm:$0xff]
        %v503 = vld [vmem:[%s4 + $0x58] sm:$0xff]
        %v504 = vld [vmem:[%s4 + $0x60] sm:$0xff]
        %v505 = vld [vmem:[%s4 + $0x68] sm:$0xff]
        %v506 = vld [vmem:[%s4 + $0x70] sm:$0xff]
        %v507 = vld [vmem:[%s4 + $0x78] sm:$0xff]
        %508 = vmatprep.subr.mxu0 0.0
        %509 = vmatpush1.msra.mxu0 %v507
        %510 = vmatprep.subr.mxu0 0.0
        %511 = vmatpush1.msra.mxu0 %v506
        %512 = vmatprep.subr.mxu0 0.0
        %513 = vmatpush1.msra.mxu0 %v505
        %514 = vmatprep.subr.mxu0 0.0
        %515 = vmatpush1.msra.mxu0 %v504
        %516 = vmatprep.subr.mxu0 0.0
        %517 = vmatpush1.msra.mxu0 %v503
        %518 = vmatprep.subr.mxu0 0.0
        %519 = vmatpush1.msra.mxu0 %v502
        %520 = vmatprep.subr.mxu0 0.0
        %521 = vmatpush1.msra.mxu0 %v501
        %522 = vmatprep.subr.mxu0 0.0
        %523 = vmatpush1.msra.mxu0 %v500
        %524 = vmatprep.subr.mxu0 0.0
        %525 = vmatpush1.msra.mxu0 %v499
        %526 = vmatprep.subr.mxu0 0.0
        %527 = vmatpush1.msra.mxu0 %v498
        %528 = vmatprep.subr.mxu0 0.0
        %529 = vmatpush1.msra.mxu0 %v497
        %530 = vmatprep.subr.mxu0 0.0
        %531 = vmatpush1.msra.mxu0 %v496
        %532 = vmatprep.subr.mxu0 0.0
        %533 = vmatpush1.msra.mxu0 %v495
        %534 = vmatprep.subr.mxu0 0.0
        %535 = vmatpush1.msra.mxu0 %v494
        %536 = vmatprep.subr.mxu0 0.0
        %537 = vmatpush1.msra.mxu0 %v493
        %538 = vmatprep.subr.mxu0 0.0
        %539 = vmatpush1.msra.mxu0 %v492
        %540 = vmatprep.subr.mxu0 0.0
        %541 = vmatpush2.msra.mxu0 0.0
        %542 = vmatprep.subr.mxu0 0.0
        %543 = vmatpush2.msra.mxu0 0.0
        %544 = vmatprep.subr.mxu0 0.0
        %545 = vmatpush2.msra.mxu0 0.0
        %546 = vmatprep.subr.mxu0 0.0
        %547 = vmatpush2.msra.mxu0 0.0
        %548 = vmatprep.subr.mxu0 0.0
        %549 = vmatpush2.msra.mxu0 0.0
        %550 = vmatprep.subr.mxu0 0.0
        %551 = vmatpush2.msra.mxu0 0.0
        %552 = vmatprep.subr.mxu0 0.0
        %553 = vmatpush2.msra.mxu0 0.0
        %554 = vmatprep.subr.mxu0 0.0
        %555 = vmatpush2.msra.mxu0 0.0
        %556 = vmatprep.subr.mxu0 0.0
        %557 = vmatpush2.msra.mxu0 0.0
        %558 = vmatprep.subr.mxu0 0.0
        %559 = vmatpush2.msra.mxu0 0.0
        %560 = vmatprep.subr.mxu0 0.0
        %561 = vmatpush2.msra.mxu0 0.0
        %562 = vmatprep.subr.mxu0 0.0
        %563 = vmatpush2.msra.mxu0 0.0
        %564 = vmatprep.subr.mxu0 0.0
        %565 = vmatpush2.msra.mxu0 0.0
        %566 = vmatprep.subr.mxu0 0.0
        %567 = vmatpush2.msra.mxu0 0.0
        %568 = vmatprep.subr.mxu0 0.0
        %569 = vmatpush2.msra.mxu0 0.0
        %570 = vmatprep.subr.mxu0 0.0
        %571 = vmatpush2.msra.mxu0 0.0
        %572 = vmatprep.mubr.f32.mxu0 0.0
        %573 = vmatmul.mubr.f32.gmra.mxu0 %v487
        %v574 = vpop.f32.mrf.mxu0
        %v575 = vadd.f32 0.0, %v574
        %v576 = vpop.f32.mrf.mxu0
        %577 = vdwg.mxu0
        %578 = vmatprep.subr.mxu0 0.0
        %579 = vmatpush1.msra.mxu0 0.0
        %580 = vmatprep.subr.mxu0 0.0
        %581 = vmatpush1.msra.mxu0 0.0
        %582 = vmatprep.subr.mxu0 0.0
        %583 = vmatpush1.msra.mxu0 0.0
        %584 = vmatprep.subr.mxu0 0.0
        %585 = vmatpush1.msra.mxu0 0.0
        %586 = vmatprep.subr.mxu0 0.0
        %587 = vmatpush1.msra.mxu0 0.0
        %588 = vmatprep.subr.mxu0 0.0
        %589 = vmatpush1.msra.mxu0 0.0
        %590 = vmatprep.subr.mxu0 0.0
        %591 = vmatpush1.msra.mxu0 0.0
        %592 = vmatprep.subr.mxu0 0.0
        %593 = vmatpush1.msra.mxu0 0.0
        %594 = vmatprep.subr.mxu0 0.0
        %595 = vmatpush1.msra.mxu0 0.0
        %596 = vmatprep.subr.mxu0 0.0
        %597 = vmatpush1.msra.mxu0 0.0
        %598 = vmatprep.subr.mxu0 0.0
        %599 = vmatpush1.msra.mxu0 0.0
        %600 = vmatprep.subr.mxu0 0.0
        %601 = vmatpush1.msra.mxu0 0.0
        %602 = vmatprep.subr.mxu0 0.0
        %603 = vmatpush1.msra.mxu0 %v491
        %604 = vmatprep.subr.mxu0 0.0
        %605 = vmatpush1.msra.mxu0 %v490
        %606 = vmatprep.subr.mxu0 0.0
        %607 = vmatpush1.msra.mxu0 %v489
        %608 = vmatprep.subr.mxu0 0.0
        %609 = vmatpush1.msra.mxu0 %v488
        %610 = vmatprep.subr.mxu0 0.0
        %611 = vmatpush2.msra.mxu0 0.0
        %612 = vmatprep.subr.mxu0 0.0
        %613 = vmatpush2.msra.mxu0 0.0
        %614 = vmatprep.subr.mxu0 0.0
        %615 = vmatpush2.msra.mxu0 0.0
        %616 = vmatprep.subr.mxu0 0.0
        %617 = vmatpush2.msra.mxu0 0.0
        %618 = vmatprep.subr.mxu0 0.0
        %619 = vmatpush2.msra.mxu0 0.0
        %620 = vmatprep.subr.mxu0 0.0
        %621 = vmatpush2.msra.mxu0 0.0
        %622 = vmatprep.subr.mxu0 0.0
        %623 = vmatpush2.msra.mxu0 0.0
        %624 = vmatprep.subr.mxu0 0.0
        %625 = vmatpush2.msra.mxu0 0.0
        %626 = vmatprep.subr.mxu0 0.0
        %627 = vmatpush2.msra.mxu0 0.0
        %628 = vmatprep.subr.mxu0 0.0
        %629 = vmatpush2.msra.mxu0 0.0
        %630 = vmatprep.subr.mxu0 0.0
        %631 = vmatpush2.msra.mxu0 0.0
        %632 = vmatprep.subr.mxu0 0.0
        %633 = vmatpush2.msra.mxu0 0.0
        %634 = vmatprep.subr.mxu0 0.0
        %635 = vmatpush2.msra.mxu0 0.0
        %636 = vmatprep.subr.mxu0 0.0
        %637 = vmatpush2.msra.mxu0 0.0
        %638 = vmatprep.subr.mxu0 0.0
        %639 = vmatpush2.msra.mxu0 0.0
        %640 = vmatprep.subr.mxu0 0.0
        %641 = vmatpush2.msra.mxu0 0.0
        %642 = vmatprep.mubr.f32.mxu0 0.0
        %643 = vmatmul.mubr.f32.gmra.mxu0 %v415
        %v644 = vpop.f32.mrf.mxu0
        %v645 = vadd.f32 %v575, %v644
        %v646 = vpop.f32.mrf.mxu0
        %647 = vdwg.mxu0
        %v648 = vld [vmem:[%s5] sm:$0x1]
        %v650 = vlaneseq
        %v651 = vshrl.u32 %v650, 7
        %v652 = vsub.s32 0, %v651
        %v653 = vrot.slane %v648, %v652
        %v655 = vadd.f32 %v645, %v653
        %vm656 = vcmp.gt.f32.partialorder %v655, 0.0
        %v657 = vmul.f32 %v655, 0.01
        %v658 = vsel %vm656, %v655, %v657
        %v659 = vld [vmem:[#allocation7] sm:$0xff]
        %v660 = vld [vmem:[#allocation7 + $0x8] sm:$0xff]
        %v661 = vld [vmem:[#allocation7 + $0x10] sm:$0xff]
        %v662 = vld [vmem:[#allocation7 + $0x18] sm:$0xff]
        %v663 = vld [vmem:[#allocation7 + $0x20] sm:$0xff]
        %v664 = vld [vmem:[#allocation7 + $0x28] sm:$0xff]
        %v665 = vld [vmem:[#allocation7 + $0x30] sm:$0xff]
        %v666 = vld [vmem:[#allocation7 + $0x38] sm:$0xff]
        %v667 = vld [vmem:[#allocation7 + $0x40] sm:$0xff]
        %v668 = vld [vmem:[#allocation7 + $0x48] sm:$0xff]
        %v669 = vld [vmem:[#allocation7 + $0x50] sm:$0xff]
        %v670 = vld [vmem:[#allocation7 + $0x58] sm:$0xff]
        %v671 = vld [vmem:[#allocation7 + $0x60] sm:$0xff]
        %v672 = vld [vmem:[#allocation7 + $0x68] sm:$0xff]
        %v673 = vld [vmem:[#allocation7 + $0x70] sm:$0xff]
        %v674 = vld [vmem:[#allocation7 + $0x78] sm:$0xff]
        %v675 = vld [vmem:[%s7] sm:$0x1]
        %v677 = vlaneseq
        %v678 = vshrl.u32 %v677, 7
        %v679 = vsub.s32 0, %v678
        %v680 = vrot.slane %v675, %v679
        %682 = vmatprep.subr.mxu0 0.0
        %683 = vmatpush1.msra.mxu0 %v674
        %684 = vmatprep.subr.mxu0 0.0
        %685 = vmatpush1.msra.mxu0 %v673
        %686 = vmatprep.subr.mxu0 0.0
        %687 = vmatpush1.msra.mxu0 %v672
        %688 = vmatprep.subr.mxu0 0.0
        %689 = vmatpush1.msra.mxu0 %v671
        %690 = vmatprep.subr.mxu0 0.0
        %691 = vmatpush1.msra.mxu0 %v670
        %692 = vmatprep.subr.mxu0 0.0
        %693 = vmatpush1.msra.mxu0 %v669
        %694 = vmatprep.subr.mxu0 0.0
        %695 = vmatpush1.msra.mxu0 %v668
        %696 = vmatprep.subr.mxu0 0.0
        %697 = vmatpush1.msra.mxu0 %v667
        %698 = vmatprep.subr.mxu0 0.0
        %699 = vmatpush1.msra.mxu0 %v666
        %700 = vmatprep.subr.mxu0 0.0
        %701 = vmatpush1.msra.mxu0 %v665
        %702 = vmatprep.subr.mxu0 0.0
        %703 = vmatpush1.msra.mxu0 %v664
        %704 = vmatprep.subr.mxu0 0.0
        %705 = vmatpush1.msra.mxu0 %v663
        %706 = vmatprep.subr.mxu0 0.0
        %707 = vmatpush1.msra.mxu0 %v662
        %708 = vmatprep.subr.mxu0 0.0
        %709 = vmatpush1.msra.mxu0 %v661
        %710 = vmatprep.subr.mxu0 0.0
        %711 = vmatpush1.msra.mxu0 %v660
        %712 = vmatprep.subr.mxu0 0.0
        %713 = vmatpush1.msra.mxu0 %v659
        %714 = vmatprep.subr.mxu0 0.0
        %715 = vmatpush2.msra.mxu0 0.0
        %716 = vmatprep.subr.mxu0 0.0
        %717 = vmatpush2.msra.mxu0 0.0
        %718 = vmatprep.subr.mxu0 0.0
        %719 = vmatpush2.msra.mxu0 0.0
        %720 = vmatprep.subr.mxu0 0.0
        %721 = vmatpush2.msra.mxu0 0.0
        %722 = vmatprep.subr.mxu0 0.0
        %723 = vmatpush2.msra.mxu0 0.0
        %724 = vmatprep.subr.mxu0 0.0
        %725 = vmatpush2.msra.mxu0 0.0
        %726 = vmatprep.subr.mxu0 0.0
        %727 = vmatpush2.msra.mxu0 0.0
        %728 = vmatprep.subr.mxu0 0.0
        %729 = vmatpush2.msra.mxu0 0.0
        %730 = vmatprep.subr.mxu0 0.0
        %731 = vmatpush2.msra.mxu0 0.0
        %732 = vmatprep.subr.mxu0 0.0
        %733 = vmatpush2.msra.mxu0 0.0
        %734 = vmatprep.subr.mxu0 0.0
        %735 = vmatpush2.msra.mxu0 0.0
        %736 = vmatprep.subr.mxu0 0.0
        %737 = vmatpush2.msra.mxu0 0.0
        %738 = vmatprep.subr.mxu0 0.0
        %739 = vmatpush2.msra.mxu0 0.0
        %740 = vmatprep.subr.mxu0 0.0
        %741 = vmatpush2.msra.mxu0 0.0
        %742 = vmatprep.subr.mxu0 0.0
        %743 = vmatpush2.msra.mxu0 0.0
        %744 = vmatprep.subr.mxu0 0.0
        %745 = vmatpush2.msra.mxu0 0.0
        %746 = vmatprep.mubr.f32.mxu0 0.0
        %747 = vmatmul.mubr.f32.gmra.mxu0 %v658
        %v748 = vpop.f32.mrf.mxu0
        %v749 = vadd.f32 %v680, %v748
        %v750 = vpop.f32.mrf.mxu0
        %751 = vdwg.mxu0
        %vm752 = vcmp.gt.f32.partialorder %v749, 0.0
        %v753 = vmul.f32 %v749, 0.01
        %v754 = vsel %vm752, %v749, %v753
        %v755 = vld [vmem:[%s8] sm:$0x1]
        %v757 = vlaneseq
        %v758 = vshrl.u32 %v757, 7
        %v759 = vsub.s32 0, %v758
        %v760 = vrot.slane %v755, %v759
        %v762 = vmul.f32 %v754, %v760
        %763 = vadd.xlane.f32.xlu0 %v762
        %v764 = vpop.xlane.xlu0 %763
        %v765 = vld [vmem:[#allocation2] sm:$0x1]
        %v767 = vlaneseq
        %v768 = vshrl.u32 %v767, 7
        %v769 = vsub.s32 0, %v768
        %v770 = vrot.slane %v765, %v769
        %v772 = vadd.f32 %v764, %v770
        %vm773 = vcmask 7168
        %774 = vst.msk [vmem:[%s400] sm:$0xff] %vm773, %v772
        %p775 = scmp.lt.s32.totalorder %s25, 1
        %s776 = scalar_select %p775, %s25, 1
        %s777 = smul.addr %s776, 8
        %s778 = scalar_lea.vmem %s10, %s777
        // Predicated region
        $region73: #{adults_classifier_embeddings_forward.1} parent=59 // pred_check
          %p779 = pneg %p258
        $region74: #{adults_classifier_embeddings_forward.1} parent=59 // pred_check_branch
          %781 = sbr.rel (%p779) target = $region76
        $region75: #{adults_classifier_embeddings_forward.1} parent=59 // pred_region
          _
        $region76: #{adults_classifier_embeddings_forward.1} parent=59 // pred_fallthru
          _
      $region60: #{adults_classifier_embeddings_forward.1} parent=5 // pred_fallthru
        _
      %p782 = scmp.le.s32.totalorder 2, %s20
      // Predicated region
      $region77: #{adults_classifier_embeddings_forward.1} parent=5 // pred_check
        %p783 = pneg %p782
      $region78: #{adults_classifier_embeddings_forward.1} parent=5 // pred_check_branch
        %785 = sbr.rel (%p783) target = $region80
      $region79: #{adults_classifier_embeddings_forward.1} parent=5 // pred_region
        %s786 = ssub.s32 %s20, 2
        // Predicated region
        $region81: #{adults_classifier_embeddings_forward.1} parent=79 // pred_check
          %p787 = pneg %p264
        $region82: #{adults_classifier_embeddings_forward.1} parent=79 // pred_check_branch
          %789 = sbr.rel (%p787) target = $region84
        $region83: #{adults_classifier_embeddings_forward.1} parent=79 // pred_region
          %p790 = scmp.lt.s32.totalorder %s26, 1
          %s791 = scalar_select %p790, %s26, 1
          %s792 = smul.addr %s791, 8
          %s793 = scalar_lea.vmem %s10, %s792
        $region84: #{adults_classifier_embeddings_forward.1} parent=79 // pred_fallthru
          _
      $region80: #{adults_classifier_embeddings_forward.1} parent=5 // pred_fallthru
        _
    $region6: #{adults_classifier_embeddings_forward.1} parent=1 // loop_footer
      %s24 = sadd.s32 1, %s20
    $region7: #{adults_classifier_embeddings_forward.1} parent=1 // loop_footer_branch
      %19 = sbr.rel target = $region3
    $region8: #{adults_classifier_embeddings_forward.1} parent=1 // loop_exit
      _
    %794 = vsyncpa [#allocation4], 1
    %s795 = scalar_lea.sflag [#allocation4], 1
    %796 = vsyncpa %s795, 1
    %797 = vsyncpa [#allocation6], 1

</llo_original>
